<compile_context>
chip_gen: v7x
topology: tpu7x:2x2x1
jax: 0.10.0
libtpu: 0.0.40
codegen_flags: <defaults>
</compile_context>

<pallas_src>
import functools

import jax
import jax.numpy as jnp
from jax import lax
from jax.experimental import pallas as pl
from jax.experimental.pallas import tpu as pltpu


def _round_up(x, m):
    return ((x + m - 1) // m) * m


def _pad2(a, rows, cols, dtype):
    a = a.astype(dtype)
    pr, pc = rows - a.shape[0], cols - a.shape[1]
    if pr or pc:
        a = jnp.pad(a, ((0, pr), (0, pc)))
    return a


# ----------------------------------------------------------------------------
# Pass 1: dis = D^{-1/2} (zero-degree -> 0), and xs = dis * x  (pre-scaled x)
# ----------------------------------------------------------------------------
def _degree_scale_kernel(adj_ref, x_ref, dis_ref, xs_ref, acc_ref):
    k = pl.program_id(1)

    @pl.when(k == 0)
    def _():
        acc_ref[...] = jnp.zeros_like(acc_ref)

    # Partial row sums of this adjacency block; accumulate in f32 even when
    # adj is stored compressed (bf16).
    acc_ref[...] += jnp.sum(adj_ref[...].astype(jnp.float32), axis=1,
                            keepdims=True)

    @pl.when(k == pl.num_programs(1) - 1)
    def _():
        deg = acc_ref[...]
        dis = jnp.where(deg > 0.0, lax.rsqrt(deg), 0.0)   # matches pow(-0.5), inf->0
        dis_ref[...] = dis
        xs_ref[...] = (dis * x_ref[...]).astype(xs_ref.dtype)


# ----------------------------------------------------------------------------
# Pass 2: g = dis * ( relu( dis * (A @ xs) @ W1 + b1 ) @ W2 )
#         (layer-2's weight multiply and its column pre-scale folded in)
# ----------------------------------------------------------------------------
def _layer1_kernel(dis_ref, adj_ref, xs_ref, w1_ref, b1_ref, w2_ref,
                   g_ref, acc_ref, *, tk, xs_resident, compute_dtype):
    k = pl.program_id(1)

    @pl.when(k == 0)
    def _():
        acc_ref[...] = jnp.zeros_like(acc_ref)

    if xs_resident:
        xs = xs_ref[pl.ds(pl.multiple_of(k * tk, tk), tk), :]
    else:
        xs = xs_ref[...]
    acc_ref[...] += jnp.dot(adj_ref[...], xs,
                            preferred_element_type=jnp.float32)

    @pl.when(k == pl.num_programs(1) - 1)
    def _():
        dis = dis_ref[...]                                     # (tm, 1) f32
        t = (dis * acc_ref[...]).astype(compute_dtype)
        h = jnp.dot(t, w1_ref[...], preferred_element_type=jnp.float32)
        h = jnp.maximum(h + b1_ref[...], 0.0).astype(compute_dtype)  # ReLU f32
        g = jnp.dot(h, w2_ref[...], preferred_element_type=jnp.float32)
        g_ref[...] = (dis * g).astype(g_ref.dtype)             # pre-scale for pass 3


# ----------------------------------------------------------------------------
# Pass 3: out = dis * (A @ g) + b2
# ----------------------------------------------------------------------------
def _layer2_kernel(dis_ref, adj_ref, g_ref, b2_ref, out_ref, acc_ref, *,
                   tk, g_resident):
    k = pl.program_id(1)

    @pl.when(k == 0)
    def _():
        acc_ref[...] = jnp.zeros_like(acc_ref)

    if g_resident:
        gv = g_ref[pl.ds(pl.multiple_of(k * tk, tk), tk), :]
    else:
        gv = g_ref[...]
    acc_ref[...] += jnp.dot(adj_ref[...], gv,
                            preferred_element_type=jnp.float32)

    @pl.when(k == pl.num_programs(1) - 1)
    def _():
        out_ref[...] = (dis_ref[...] * acc_ref[...]
                        + b2_ref[...]).astype(out_ref.dtype)


# ----------------------------------------------------------------------------
# Wrapper
# ----------------------------------------------------------------------------
def gcn_forward(adj, x, w1, b1, w2, b2, *, block_n=512,
                compute_dtype=jnp.float32):
    """Two-layer GCN forward: gcn2(adj, relu(gcn1(adj, x)))."""
    n = adj.shape[0]
    fin, hid = w1.shape
    fout = w2.shape[1]
    f32 = jnp.float32
    cd = jnp.dtype(compute_dtype)
    elt = cd.itemsize
    sub = 8 * max(1, 4 // elt)          # sublane granularity: 8 f32, 16 bf16

    # Node-dim tiling.  For small graphs keep >=2 row tiles (v7x megacore).
    if n <= block_n:
        n_p = _round_up(n, 2 * sub)
        tk = n_p                                   # full K extent (1 K step)
        tm = n_p // 2 if n_p >= 128 else n_p
    else:
        n_p = _round_up(n, block_n)
        tm = tk = block_n
    # Feature dims padded to 128 lanes -> lane-dense matmuls and stores.
    fin_p = _round_up(fin, 128)
    hid_p = _round_up(hid, 128)
    fout_p = _round_up(fout, 128)

    # Pad + cast ONCE in the wrapper.  adj / weights stored in compute_dtype;
    # x, biases, dis stay f32 (scaling and bias adds are done in f32).
    adj_p = _pad2(adj, n_p, n_p, cd)
    x_p = _pad2(x, n_p, fin_p, f32)
    w1_p = _pad2(w1, fin_p, hid_p, cd)
    w2_p = _pad2(w2, hid_p, fout_p, cd)
    b1_p = _pad2(b1.reshape(1, -1), 1, hid_p, f32)
    b2_p = _pad2(b2.reshape(1, -1), 1, fout_p, f32)

    grid = (n_p // tm, n_p // tk)
    n_i = grid[0]

    # Keep the K-side operands fully VMEM-resident (fetched once) when small.
    resident_budget = 4 * 1024 * 1024
    xs_resident = n_p * fin_p * elt <= resident_budget
    g_resident = n_p * fout_p * elt <= resident_budget

    adj_spec = pl.BlockSpec((tm, tk), lambda i, k: (i, k))
    dis_spec = pl.BlockSpec((tm, 1), lambda i, k: (i, 0))
    row = lambda f: pl.BlockSpec((tm, f), lambda i, k: (i, 0))
    full = lambda r, c: pl.BlockSpec((r, c), lambda i, k: (0, 0))
    xs_spec = (pl.BlockSpec((n_p, fin_p), lambda i, k: (0, 0)) if xs_resident
               else pl.BlockSpec((tk, fin_p), lambda i, k: (k, 0)))
    g_spec = (pl.BlockSpec((n_p, fout_p), lambda i, k: (0, 0)) if g_resident
              else pl.BlockSpec((tk, fout_p), lambda i, k: (k, 0)))

    # VMEM footprint estimate (double-buffered pipelined operands) -> limit.
    db = lambda b: 2 * b
    vmem_p1 = (db(tm * tk * elt) + db(tm * fin_p * 4) + db(tm * 4)
               + db(tm * fin_p * elt) + tm * 4)
    vmem_p2 = (db(tm * tk * elt) + db(tm * 4)
               + db((n_p if xs_resident else tk) * fin_p * elt)
               + db(fin_p * hid_p * elt) + db(hid_p * 4)
               + db(hid_p * fout_p * elt) + db(tm * fout_p * elt)
               + tm * fin_p * 4)
    vmem_p3 = (db(tm * tk * elt) + db(tm * 4)
               + db((n_p if g_resident else tk) * fout_p * elt)
               + db(fout_p * 4) + db(tm * fout_p * 4) + tm * fout_p * 4)
    vmem_needed = max(vmem_p1, vmem_p2, vmem_p3) + (1 << 20)
    vmem_limit = min(64 * 1024 * 1024,
                     max(32 * 1024 * 1024, int(vmem_needed * 5 // 4)))
    cparams = pltpu.CompilerParams(
        dimension_semantics=("parallel", "arbitrary"),
        vmem_limit_bytes=vmem_limit)

    # Pass 1: dis = D^{-1/2}, xs = dis * x
    dis, xs = pl.pallas_call(
        _degree_scale_kernel,
        out_shape=(jax.ShapeDtypeStruct((n_p, 1), f32),
                   jax.ShapeDtypeStruct((n_p, fin_p), cd)),
        grid=grid,
        in_specs=[adj_spec, row(fin_p)],
        out_specs=(dis_spec, row(fin_p)),
        scratch_shapes=[pltpu.VMEM((tm, 1), f32)],
        compiler_params=cparams,
        cost_estimate=pl.CostEstimate(
            flops=int(n_p * n_p + 2 * n_p * fin_p),
            transcendentals=int(n_p),
            bytes_accessed=int(n_p * n_p * elt + n_p * fin_p * (4 + elt)
                               + n_p * 4)),
    )(adj_p, x_p)

    # Pass 2: g = dis * (relu(dis * (A @ xs) @ W1 + b1) @ W2)
    g = pl.pallas_call(
        functools.partial(_layer1_kernel, tk=tk, xs_resident=xs_resident,
                          compute_dtype=cd),
        out_shape=jax.ShapeDtypeStruct((n_p, fout_p), cd),
        grid=grid,
        in_specs=[dis_spec, adj_spec, xs_spec,
                  full(fin_p, hid_p), full(1, hid_p), full(hid_p, fout_p)],
        out_specs=row(fout_p),
        scratch_shapes=[pltpu.VMEM((tm, fin_p), f32)],
        compiler_params=cparams,
        cost_estimate=pl.CostEstimate(
            flops=int(2 * n_p * n_p * fin_p + 2 * n_p * fin_p * hid_p
                      + 2 * n_p * hid_p * fout_p),
            transcendentals=0,
            bytes_accessed=int(n_p * n_p * elt
                               + (1 if xs_resident else n_i) * n_p * fin_p * elt
                               + fin_p * hid_p * elt + hid_p * 4
                               + hid_p * fout_p * elt + n_p * fout_p * elt
                               + n_p * 4)),
    )(dis, adj_p, xs, w1_p, b1_p, w2_p)

    # Pass 3: out = dis * (A @ g) + b2
    out = pl.pallas_call(
        functools.partial(_layer2_kernel, tk=tk, g_resident=g_resident),
        out_shape=jax.ShapeDtypeStruct((n_p, fout_p), f32),
        grid=grid,
        in_specs=[dis_spec, adj_spec, g_spec, full(1, fout_p)],
        out_specs=row(fout_p),
        scratch_shapes=[pltpu.VMEM((tm, fout_p), f32)],
        compiler_params=cparams,
        cost_estimate=pl.CostEstimate(
            flops=int(2 * n_p * n_p * fout_p),
            transcendentals=0,
            bytes_accessed=int(n_p * n_p * elt
                               + (1 if g_resident else n_i) * n_p * fout_p * elt
                               + n_p * fout_p * 4 + fout_p * 4 + n_p * 4)),
    )(dis, adj_p, g, b2_p)

    return out[:n, :fout]


def xavier_uniform(key, fan_in, fan_out):
    limit = jnp.sqrt(6.0 / (fan_in + fan_out))
    return jax.random.uniform(
        key, (fan_in, fan_out), dtype=jnp.float32, minval=-limit, maxval=limit)


if __name__ == "__main__":
    # Small shapes: N=8 nodes, in_features=16, hidden=32, out=16
    N, FIN, HID, FOUT = 8, 16, 32, 16

    key = jax.random.PRNGKey(0)
    k_adj, k_x, k_w1, k_w2, k_b1, k_b2 = jax.random.split(key, 6)

    # Symmetric non-negative adjacency; zero a row/col to exercise the
    # zero-degree (inf -> 0) normalization path.
    a = jax.random.uniform(k_adj, (N, N), dtype=jnp.float32)
    adj = (a + a.T) * 0.5
    adj = adj.at[0, :].set(0.0).at[:, 0].set(0.0)

    x = jax.random.normal(k_x, (N, FIN), dtype=jnp.float32)
    w1 = xavier_uniform(k_w1, FIN, HID)
    b1 = 0.1 * jax.random.normal(k_b1, (HID,), dtype=jnp.float32)
    w2 = xavier_uniform(k_w2, HID, FOUT)
    b2 = 0.1 * jax.random.normal(k_b2, (FOUT,), dtype=jnp.float32)

    # Pure-JAX reference (same math as the torch module, no Pallas).
    def ref_layer(adj_, x_, w_, b_):
        deg = jnp.sum(adj_, axis=1)
        dis = jnp.where(deg > 0, 1.0 / jnp.sqrt(deg), 0.0)
        adj_n = adj_ * dis[:, None] * dis[None, :]
        return adj_n @ x_ @ w_ + b_

    # Test 1: small graph, single-tile path, f32.
    out = gcn_forward(adj, x, w1, b1, w2, b2)
    jax.block_until_ready(out)
    ref = ref_layer(adj, jax.nn.relu(ref_layer(adj, x, w1, b1)), w2, b2)
    assert out.shape == (N, FOUT)
    assert jnp.allclose(out, ref, atol=1e-4, rtol=1e-4)

    # Test 2: larger graph, exercises the 3x3 tiled accumulator grid with
    # VMEM-resident xs/g (in-kernel pl.ds slicing), f32.
    N2 = 300
    k_adj2, k_x2 = jax.random.split(jax.random.PRNGKey(1), 2)
    a2 = jax.random.uniform(k_adj2, (N2, N2), dtype=jnp.float32)
    adj2 = (a2 + a2.T) * 0.5
    x2 = jax.random.normal(k_x2, (N2, FIN), dtype=jnp.float32)
    out2 = gcn_forward(adj2, x2, w1, b1, w2, b2, block_n=128)
    jax.block_until_ready(out2)
    ref2 = ref_layer(adj2, jax.nn.relu(ref_layer(adj2, x2, w1, b1)), w2, b2)
    assert out2.shape == (N2, FOUT)
    assert jnp.allclose(out2, ref2, atol=1e-3, rtol=1e-3)

    # Test 3: bf16 compute path (adj/weights/xs/g stored bf16 in HBM, f32
    # accumulation and f32 dis/bias/ReLU).  Loose relative-Frobenius check
    # against the f32 reference.
    out3 = gcn_forward(adj2, x2, w1, b1, w2, b2, compute_dtype=jnp.bfloat16)
    jax.block_until_ready(out3)
    assert out3.shape == (N2, FOUT)
    rel = jnp.linalg.norm(out3 - ref2) / (jnp.linalg.norm(ref2) + 1e-12)
    assert rel < 3e-2, float(rel)

    print("KERNEL_OK")
</pallas_src>

<mosaic_0001>
module attributes {stable_mosaic.version = 11 : i64} {
  func.func @_degree_scale_kernel(%arg0: i32, %arg1: i32, %arg2: memref<16x16xf32, #tpu.memory_space<vmem>>, %arg3: memref<16x128xf32, #tpu.memory_space<vmem>>, %arg4: memref<16x1xf32, #tpu.memory_space<vmem>>, %arg5: memref<16x128xf32, #tpu.memory_space<vmem>>, %arg6: memref<16x1xf32, #tpu.memory_space<vmem>>) attributes {dimension_semantics = [#tpu.dimension_semantics<parallel>, #tpu.dimension_semantics<arbitrary>], iteration_bounds = array<i64: 1, 1>, scalar_prefetch = 0 : i64, scratch_operands = 1 : i64, tpu.core_type = #tpu.core_type<tc>, window_params = [{transform_indices = @transform_0, window_bounds = array<i64: 16, 16>}, {transform_indices = @transform_1, window_bounds = array<i64: 16, 128>}, {transform_indices = @transform_2, window_bounds = array<i64: 16, 1>}, {transform_indices = @transform_3, window_bounds = array<i64: 16, 128>}]} {
    %c0_i32 = arith.constant 0 : i32
    %0 = arith.cmpi eq, %arg1, %c0_i32 : i32
    %1 = arith.extui %0 : i1 to i32
    %c0_i32_0 = arith.constant 0 : i32
    %2 = arith.cmpi ne, %1, %c0_i32_0 : i32
    scf.if %2 {
      %cst_8 = arith.constant 0.000000e+00 : f32
      %12 = vector.broadcast %cst_8 : f32 to vector<16x1xf32>
      %c0_9 = arith.constant 0 : index
      %c0_10 = arith.constant 0 : index
      %13 = vector.load %arg6[%c0_9, %c0_10] : memref<16x1xf32, #tpu.memory_space<vmem>>, vector<16x1xf32>
      tpu.vector_store %arg6[%c0_9, %c0_10], %12 {strides = array<i32>} : memref<16x1xf32, #tpu.memory_space<vmem>>, vector<16x1xf32>,
    } else {
    }
    %c0 = arith.constant 0 : index
    %c0_1 = arith.constant 0 : index
    %3 = vector.load %arg6[%c0, %c0_1] : memref<16x1xf32, #tpu.memory_space<vmem>>, vector<16x1xf32>
    %c0_2 = arith.constant 0 : index
    %c0_3 = arith.constant 0 : index
    %4 = vector.load %arg2[%c0_2, %c0_3] : memref<16x16xf32, #tpu.memory_space<vmem>>, vector<16x16xf32>
    %cst = arith.constant dense<0.000000e+00> : vector<16xf32>
    %5 = vector.multi_reduction <add>, %4, %cst [1] : vector<16x16xf32> to vector<16xf32>
    %6 = vector.shape_cast %5 : vector<16xf32> to vector<16x1xf32>
    %7 = arith.addf %3, %6 : vector<16x1xf32>
    %c0_4 = arith.constant 0 : index
    %c0_5 = arith.constant 0 : index
    %8 = vector.load %arg6[%c0_4, %c0_5] : memref<16x1xf32, #tpu.memory_space<vmem>>, vector<16x1xf32>
    tpu.vector_store %arg6[%c0_4, %c0_5], %7 {strides = array<i32>} : memref<16x1xf32, #tpu.memory_space<vmem>>, vector<16x1xf32>,
    %c0_i32_6 = arith.constant 0 : i32
    %9 = arith.cmpi eq, %arg1, %c0_i32_6 : i32
    %10 = arith.extui %9 : i1 to i32
    %c0_i32_7 = arith.constant 0 : i32
    %11 = arith.cmpi ne, %10, %c0_i32_7 : i32
    scf.if %11 {
      %c0_8 = arith.constant 0 : index
      %c0_9 = arith.constant 0 : index
      %12 = vector.load %arg6[%c0_8, %c0_9] : memref<16x1xf32, #tpu.memory_space<vmem>>, vector<16x1xf32>
      %cst_10 = arith.constant 0.000000e+00 : f32
      %13 = vector.broadcast %cst_10 : f32 to vector<16x1xf32>
      %14 = arith.cmpf ogt, %12, %13 : vector<16x1xf32>
      %15 = math.rsqrt %12 : vector<16x1xf32>
      %cst_11 = arith.constant 0.000000e+00 : f32
      %16 = vector.broadcast %cst_11 : f32 to vector<16x1xf32>
      %17 = arith.select %14, %15, %16 : vector<16x1xi1>, vector<16x1xf32>
      %c0_12 = arith.constant 0 : index
      %c0_13 = arith.constant 0 : index
      %18 = vector.load %arg4[%c0_12, %c0_13] : memref<16x1xf32, #tpu.memory_space<vmem>>, vector<16x1xf32>
      tpu.vector_store %arg4[%c0_12, %c0_13], %17 {strides = array<i32>} : memref<16x1xf32, #tpu.memory_space<vmem>>, vector<16x1xf32>,
      %c0_14 = arith.constant 0 : index
      %c0_15 = arith.constant 0 : index
      %19 = vector.load %arg3[%c0_14, %c0_15] : memref<16x128xf32, #tpu.memory_space<vmem>>, vector<16x128xf32>
      %20 = vector.broadcast %17 : vector<16x1xf32> to vector<16x128xf32>
      %21 = arith.mulf %20, %19 : vector<16x128xf32>
      %c0_16 = arith.constant 0 : index
      %c0_17 = arith.constant 0 : index
      %22 = vector.load %arg5[%c0_16, %c0_17] : memref<16x128xf32, #tpu.memory_space<vmem>>, vector<16x128xf32>
      tpu.vector_store %arg5[%c0_16, %c0_17], %21 {strides = array<i32>} : memref<16x128xf32, #tpu.memory_space<vmem>>, vector<16x128xf32>,
    } else {
    }
    return
  }
  func.func @transform_0(%arg0: i32, %arg1: i32) -> (i32, i32) {
    %c0_i32 = arith.constant 0 : i32
    return %arg0, %arg1 : i32, i32
  }
  func.func @transform_1(%arg0: i32, %arg1: i32) -> (i32, i32) {
    %c0_i32 = arith.constant 0 : i32
    %c0_i32_0 = arith.constant 0 : i32
    return %arg0, %c0_i32 : i32, i32
  }
  func.func @transform_2(%arg0: i32, %arg1: i32) -> (i32, i32) {
    %c0_i32 = arith.constant 0 : i32
    %c0_i32_0 = arith.constant 0 : i32
    return %arg0, %c0_i32 : i32, i32
  }
  func.func @transform_3(%arg0: i32, %arg1: i32) -> (i32, i32) {
    %c0_i32 = arith.constant 0 : i32
    %c0_i32_0 = arith.constant 0 : i32
    return %arg0, %c0_i32 : i32, i32
  }
}

</mosaic_0001>

<llo_original>
// kernel: tpu_custom_call.1
$region0: #{tpu_custom_call.1}
  #allocation0 [shape = 'u32[]', space=smem, size = 0x4, offset = 0x4, fixed_abs, tag = 'smem constant byte address 0x4 - core index']
  #allocation1 [shape = 'u32[144,128]{1,0:T(1,128)}', space=vmem, size = 0x12000, scoped, tag = 'internal scratch']
  #allocation2 [shape = 'f32[16,1]{1,0:T(8,128)}', space=vmem, size = 0x2000, scoped, tag = 'scratch operand']
  %s0 = inlined_call_operand.hbm [shape: f32[16,16], index: 0, kind: input, shape index: {}]
  %s1 = inlined_call_operand.hbm [shape: f32[16,128], index: 1, kind: input, shape index: {}]
  %s2 = inlined_call_operand.vmem [shape: f32[16,1], index: 2, kind: output, shape index: {0}]
  %s3 = inlined_call_operand.hbm [shape: f32[16,128], index: 3, kind: output, shape index: {1}]
  %4 = xla_tuple %s2, %s3
  %s5 = sld [smem:[#allocation0]]
  $region42: #{tpu_custom_call.1} parent=0
    _
  %s7 = ssub.s32 1, %s5
  %s8 = scalar_select 0, %s7, %s5
  $region1: #{tpu_custom_call.1} parent=0
    #allocation3 [shape = 'u8[8192]{0}', space=vmem, size = 0x2000, scoped, tag = 'input window, operand 0, single buffered']
    #allocation4 [shape = 's32[1]{0}', space=sflag, size = 0x4, scoped, tag = 'scoped memory for tpu_custom_call.1']
    #allocation5 [shape = 's32[1]{0}', space=sflag, size = 0x4, scoped, tag = 'scoped memory for tpu_custom_call.1']
    #allocation6 [shape = 'u8[8192]{0}', space=vmem, size = 0x2000, scoped, tag = 'input window, operand 1, single buffered']
    #allocation7 [shape = 's32[1]{0}', space=sflag, size = 0x4, scoped, tag = 'scoped memory for tpu_custom_call.1']
    #allocation8 [shape = 'u8[8192]{0}', space=vmem, size = 0x2000, scoped, tag = 'output window, operand 1, single buffered']
    %9 = vsyncpa [#allocation4], 0
    %10 = vsyncpa [#allocation7], 0
    %11 = vsyncpa [#allocation5], 0
    // Predicated region
    $region2: #{tpu_custom_call.1} parent=1 // pred_check
      _
    $region3: #{tpu_custom_call.1} parent=1 // pred_check_branch
      %13 = sbr.rel (0) target = $region5
    $region4: #{tpu_custom_call.1} parent=1 // pred_region
      %s15 = ssub.s32 256, 256
      %16 = vsyncadd [#allocation4], %s15
      %s17 = sshll.u32 [#allocation3], 4
      %s18 = int_to_ptr.vmem [resolvable:$true] %s17
      %23 = dma.hbm_to_vmem [thread:$0]  %s0, 256, %s18, [#allocation4], 128, 128, 8
    $region5: #{tpu_custom_call.1} parent=1 // pred_fallthru
      _
    // Predicated region
    $region6: #{tpu_custom_call.1} parent=1 // pred_check
      _
    $region7: #{tpu_custom_call.1} parent=1 // pred_check_branch
      %25 = sbr.rel (0) target = $region9
    $region8: #{tpu_custom_call.1} parent=1 // pred_region
      %s27 = ssub.s32 256, 256
      %28 = vsyncadd [#allocation7], %s27
      %s29 = sshll.u32 [#allocation6], 4
      %s30 = int_to_ptr.vmem [resolvable:$true] %s29
      %35 = dma.hbm_to_vmem [thread:$0]  %s1, 256, %s30, [#allocation7], 128, 128, 8
    $region9: #{tpu_custom_call.1} parent=1 // pred_fallthru
      _
    // Predicated region
    $region10: #{tpu_custom_call.1} parent=1 // pred_check
      _
    $region11: #{tpu_custom_call.1} parent=1 // pred_check_branch
      %37 = sbr.rel (0) target = $region13
    $region12: #{tpu_custom_call.1} parent=1 // pred_region
      %38 = dma.done [#allocation4], 256
    $region13: #{tpu_custom_call.1} parent=1 // pred_fallthru
      _
    // Predicated region
    $region14: #{tpu_custom_call.1} parent=1 // pred_check
      _
    $region15: #{tpu_custom_call.1} parent=1 // pred_check_branch
      %40 = sbr.rel (0) target = $region17
    $region16: #{tpu_custom_call.1} parent=1 // pred_region
      %41 = dma.done [#allocation7], 256
    $region17: #{tpu_custom_call.1} parent=1 // pred_fallthru
      _
    %p42 = scmp.eq.s32.totalorder 0, 0
    // Predicated region
    $region18: #{tpu_custom_call.1} parent=1 // pred_check
      %p43 = pneg %p42
    $region19: #{tpu_custom_call.1} parent=1 // pred_check_branch
      %45 = sbr.rel (%p43) target = $region21
    $region20: #{tpu_custom_call.1} parent=1 // pred_region
      %vm46 = vcmask 7168
      %47 = vst.msk [vmem:[#allocation2] sm:$0xff] %vm46, 0.0
      %48 = vst.msk [vmem:[#allocation2 + $0x8] sm:$0xff] %vm46, 0.0
    $region21: #{tpu_custom_call.1} parent=1 // pred_fallthru
      _
    %v49 = vld [vmem:[#allocation2] sm:$0xff]
    %v50 = vld [vmem:[#allocation2 + $0x8] sm:$0xff]
    %v51 = vld [vmem:[#allocation3] sm:$0xff]
    %v52 = vld [vmem:[#allocation3 + $0x8] sm:$0xff]
    %vm53 = vcmask 130048
    %v54 = vsel %vm53, %v51, 0.0
    %55 = vadd.xlane.f32.xlu0 %v54
    %v56 = vpop.xlane.xlu0 %55
    %v57 = vsel %vm53, %v52, 0.0
    %58 = vadd.xlane.f32.xlu0 %v57
    %v59 = vpop.xlane.xlu0 %58
    %v60 = vadd.f32 %v49, %v56
    %v61 = vadd.f32 %v50, %v59
    %vm62 = vcmask 7168
    %63 = vst.msk [vmem:[#allocation2] sm:$0xff] %vm62, %v60
    %64 = vst.msk [vmem:[#allocation2 + $0x8] sm:$0xff] %vm62, %v61
    // Predicated region
    $region22: #{tpu_custom_call.1} parent=1 // pred_check
      %p65 = pneg %p42
    $region23: #{tpu_custom_call.1} parent=1 // pred_check_branch
      %67 = sbr.rel (%p65) target = $region25
    $region24: #{tpu_custom_call.1} parent=1 // pred_region
      %v68 = vld [vmem:[#allocation2] sm:$0xff]
      %v69 = vld [vmem:[#allocation2 + $0x8] sm:$0xff]
      %vm70 = vcmp.gt.f32.partialorder %v68, 0.0
      %vm71 = vcmp.gt.f32.partialorder %v69, 0.0
      %v72 = vrsqrt.pop %v68
      %v73 = vrsqrt.pop %v69
      %v74 = vsel %vm70, %v72, 0.0
      %v75 = vsel %vm71, %v73, 0.0
      %76 = vst.msk [vmem:[%s2] sm:$0xff] %vm62, %v74
      %77 = vst.msk [vmem:[%s2 + $0x8] sm:$0xff] %vm62, %v75
      %v78 = vld [vmem:[#allocation6] sm:$0xff]
      %v79 = vld [vmem:[#allocation6 + $0x8] sm:$0xff]
      %81 = vset.pattern.permute.xlu0 0
      %82 = vperm.xlu0 %81, %v74
      %v83 = vpop.permute.xlu0 %82
      %86 = vset.pattern.permute.xlu0 0
      %87 = vperm.xlu0 %86, %v75
      %v88 = vpop.permute.xlu0 %87
      %v90 = vmul.f32 %v83, %v78
      %v91 = vmul.f32 %v88, %v79
      %92 = vst [vmem:[#allocation8] sm:$0xff] %v90
      %93 = vst [vmem:[#allocation8 + $0x8] sm:$0xff] %v91
    $region25: #{tpu_custom_call.1} parent=1 // pred_fallthru
      _
    // Predicated region
    $region26: #{tpu_custom_call.1} parent=1 // pred_check
      _
    $region27: #{tpu_custom_call.1} parent=1 // pred_check_branch
      %95 = sbr.rel (0) target = $region29
    $region28: #{tpu_custom_call.1} parent=1 // pred_region
      _
    $region29: #{tpu_custom_call.1} parent=1 // pred_fallthru
      _
    // Predicated region
    $region30: #{tpu_custom_call.1} parent=1 // pred_check
      _
    $region31: #{tpu_custom_call.1} parent=1 // pred_check_branch
      %97 = sbr.rel (0) target = $region33
    $region32: #{tpu_custom_call.1} parent=1 // pred_region
      %s99 = ssub.s32 256, 256
      %100 = vsyncadd [#allocation5], %s99
      %s101 = sshll.u32 [#allocation8], 4
      %s102 = int_to_ptr.vmem [resolvable:$true] %s101
      %107 = dma.vmem_to_hbm [thread:$0]  %s102, 256, %s3, [#allocation5], 128, 128, 8
    $region33: #{tpu_custom_call.1} parent=1 // pred_fallthru
      _
    // Predicated region
    $region34: #{tpu_custom_call.1} parent=1 // pred_check
      _
    $region35: #{tpu_custom_call.1} parent=1 // pred_check_branch
      %109 = sbr.rel (0) target = $region37
    $region36: #{tpu_custom_call.1} parent=1 // pred_region
      _
    $region37: #{tpu_custom_call.1} parent=1 // pred_fallthru
      _
    // Predicated region
    $region38: #{tpu_custom_call.1} parent=1 // pred_check
      _
    $region39: #{tpu_custom_call.1} parent=1 // pred_check_branch
      %111 = sbr.rel (0) target = $region41
    $region40: #{tpu_custom_call.1} parent=1 // pred_region
      %112 = dma.done [#allocation5], 256
    $region41: #{tpu_custom_call.1} parent=1 // pred_fallthru
      _
    %113 = vsyncpa [#allocation4], 1
    %114 = vsyncpa [#allocation7], 1
    %115 = vsyncpa [#allocation5], 1

</llo_original>
